<compile_context>
chip_gen: v7x
topology: tpu7x:2x2x1
jax: 0.10.0
libtpu: 0.0.40
codegen_flags: <defaults>
</compile_context>

<pallas_src>
import jax
import jax.numpy as jnp
from jax.experimental import pallas as pl
from jax.experimental.pallas import tpu as pltpu


def rnn_seq_kernel(x_ref, h0_ref,
                   w1x_ref, w1h_ref, b1_ref,
                   woh_ref, woo_ref, boo_ref,
                   out_ref, hfin_ref,
                   h_scratch):
    H = h_scratch.shape[1]

    # First timestep of this batch block: load the initial hidden state.
    @pl.when(pl.program_id(1) == 0)
    def _init():
        h_scratch[...] = h0_ref[...]

    x = x_ref[0]                              # [bb, I]  bf16
    h_f32 = h_scratch[...]                    # [bb, H]  f32 carry
    h_bf = h_f32.astype(jnp.bfloat16)

    # Fused stage 1:  cat(x, h) @ [W_i2h | W_i2o]  ->  [bb, H+O]   (f32 accum)
    s1 = (jnp.dot(x, w1x_ref[...], preferred_element_type=jnp.float32)
          + jnp.dot(h_bf, w1h_ref[...], preferred_element_type=jnp.float32)
          + b1_ref[...])                       # bias [1, H+O] f32, broadcast

    hidden = s1[:, :H]                         # [bb, H]  (new hidden state)
    output = s1[:, H:]                         # [bb, O]

    # Stage 2:  o2o(cat(hidden_new, output))
    out2 = (jnp.dot(hidden.astype(jnp.bfloat16), woh_ref[...],
                    preferred_element_type=jnp.float32)
            + jnp.dot(output.astype(jnp.bfloat16), woo_ref[...],
                      preferred_element_type=jnp.float32)
            + boo_ref[...])                    # [bb, O] f32

    # nn.Dropout(0.1) is identity in eval mode.
    # TODO(synk): training-mode dropout (pltpu.prng_seed + prng_random_bits mask, 1/(1-p) scale).

    # LogSoftmax over the feature dim (f32, max-subtracted).
    m = jnp.max(out2, axis=-1, keepdims=True)
    lse = jnp.log(jnp.sum(jnp.exp(out2 - m), axis=-1, keepdims=True)) + m
    out_ref[0] = (out2 - lse).astype(out_ref.dtype)

    # Carry hidden to the next timestep; keep the "final hidden" output current.
    h_scratch[...] = hidden
    hfin_ref[...] = hidden.astype(hfin_ref.dtype)


def rnn_forward(x_seq, h0, params):
    """Run the recurrence over a whole sequence inside one pallas_call.

    x_seq: [T, B, I]   h0: [B, H]
    returns (log_probs [T, B, O] f32, final hidden [B, H] f32)
    """
    T, B, I = x_seq.shape
    H = params["w1_h"].shape[0]
    HO = params["w1_h"].shape[1]
    O = HO - H

    # One batch block per TensorCore-shardable grid step (bb=B here since B is small).
    bb = B if B <= 128 else 128
    assert B % bb == 0
    BB = B // bb

    x_bf = x_seq.astype(jnp.bfloat16)
    h0_f = h0.astype(jnp.float32)

    flops = 2 * T * B * ((I + H) * (H + O) + (H + O) * O)
    bytes_accessed = int(
        x_bf.size * 2 + h0_f.size * 4
        + sum(v.size * v.dtype.itemsize for v in params.values())
        + T * B * O * 4 + B * H * 4)

    out, h_fin = pl.pallas_call(
        rnn_seq_kernel,
        out_shape=(jax.ShapeDtypeStruct((T, B, O), jnp.float32),
                   jax.ShapeDtypeStruct((B, H), jnp.float32)),
        grid_spec=pltpu.PrefetchScalarGridSpec(
            num_scalar_prefetch=0,
            grid=(BB, T),                      # batch blocks (parallel), time (recurrent)
            in_specs=[
                pl.BlockSpec((1, bb, I), lambda b, t: (t, b, 0)),   # x_t
                pl.BlockSpec((bb, H),    lambda b, t: (b, 0)),      # h0
                # weights/biases: constant block index -> resident, DMA'd once
                pl.BlockSpec((I, HO), lambda b, t: (0, 0)),
                pl.BlockSpec((H, HO), lambda b, t: (0, 0)),
                pl.BlockSpec((1, HO), lambda b, t: (0, 0)),
                pl.BlockSpec((H, O),  lambda b, t: (0, 0)),
                pl.BlockSpec((O, O),  lambda b, t: (0, 0)),
                pl.BlockSpec((1, O),  lambda b, t: (0, 0)),
            ],
            out_specs=(
                pl.BlockSpec((1, bb, O), lambda b, t: (t, b, 0)),   # log-probs per step
                pl.BlockSpec((bb, H),    lambda b, t: (b, 0)),      # final hidden
            ),
            scratch_shapes=[pltpu.VMEM((bb, H), jnp.float32)],      # hidden carry
        ),
        compiler_params=pltpu.CompilerParams(
            dimension_semantics=("parallel", "arbitrary")),
        cost_estimate=pl.CostEstimate(flops=flops,
                                      transcendentals=T * B * O,
                                      bytes_accessed=bytes_accessed),
    )(x_bf, h0_f,
      params["w1_x"], params["w1_h"], params["b1"],
      params["w_o2o_h"], params["w_o2o_o"], params["b_o2o"])
    return out, h_fin


def rnn_step(x, h, params):
    """Single-step API matching the original nn.Module forward: (x [B,I], h [B,H])."""
    out, h_new = rnn_forward(x[None], h, params)
    return out[0], h_new


def init_params(key, input_size, hidden_size, output_size):
    """PyTorch-Linear-style init (uniform +/- 1/sqrt(fan_in)); weights stored
    transposed [in, out], bf16; i2h and i2o are packed column-wise (fused stage 1)."""
    I, H, O = input_size, hidden_size, output_size

    def linear(k, fan_in, fan_out):
        kw, kb = jax.random.split(k)
        bound = 1.0 / (fan_in ** 0.5)
        w = jax.random.uniform(kw, (fan_in, fan_out), jnp.float32, -bound, bound)
        b = jax.random.uniform(kb, (1, fan_out), jnp.float32, -bound, bound)
        return w, b

    k1, k2, k3 = jax.random.split(key, 3)
    w_i2h, b_i2h = linear(k1, I + H, H)
    w_i2o, b_i2o = linear(k2, I + H, O)
    w_o2o, b_o2o = linear(k3, H + O, O)

    w1 = jnp.concatenate([w_i2h, w_i2o], axis=1)          # [I+H, H+O]
    return {
        "w1_x": w1[:I].astype(jnp.bfloat16),               # [I, H+O]
        "w1_h": w1[I:].astype(jnp.bfloat16),               # [H, H+O]
        "b1":   jnp.concatenate([b_i2h, b_i2o], axis=1),   # [1, H+O] f32
        "w_o2o_h": w_o2o[:H].astype(jnp.bfloat16),          # [H, O]
        "w_o2o_o": w_o2o[H:].astype(jnp.bfloat16),          # [O, O]
        "b_o2o":   b_o2o,                                   # [1, O] f32
    }


def rnn_reference(x_seq, h0, params):
    """Pure-JAX reference with the same bf16-compute / f32-accumulate dtype path."""
    H = params["w1_h"].shape[0]
    h = h0.astype(jnp.float32)
    outs = []
    for t in range(x_seq.shape[0]):
        x = x_seq[t].astype(jnp.bfloat16)
        s1 = (jnp.dot(x, params["w1_x"], preferred_element_type=jnp.float32)
              + jnp.dot(h.astype(jnp.bfloat16), params["w1_h"],
                        preferred_element_type=jnp.float32)
              + params["b1"])
        hidden, output = s1[:, :H], s1[:, H:]
        out2 = (jnp.dot(hidden.astype(jnp.bfloat16), params["w_o2o_h"],
                        preferred_element_type=jnp.float32)
                + jnp.dot(output.astype(jnp.bfloat16), params["w_o2o_o"],
                          preferred_element_type=jnp.float32)
                + params["b_o2o"])
        outs.append(jax.nn.log_softmax(out2, axis=-1))
        h = hidden
    return jnp.stack(outs), h


if __name__ == "__main__":
    T, B, I, H, O = 8, 8, 64, 128, 128
    key = jax.random.PRNGKey(0)
    kp, kx = jax.random.split(key, 2)

    params = init_params(kp, I, H, O)
    x_seq = jax.random.normal(kx, (T, B, I), jnp.float32)
    h0 = jnp.zeros((B, H), jnp.float32)          # matches initHidden()

    out_seq, h_fin = jax.jit(rnn_forward)(x_seq, h0, params)
    jax.block_until_ready((out_seq, h_fin))

    ref_out, ref_h = rnn_reference(x_seq, h0, params)

    assert out_seq.shape == (T, B, O) and h_fin.shape == (B, H)
    assert jnp.allclose(jnp.sum(jnp.exp(out_seq), axis=-1), 1.0, atol=1e-3)
    assert jnp.allclose(out_seq, ref_out, atol=2e-2, rtol=2e-2)
    assert jnp.allclose(h_fin, ref_h, atol=2e-2, rtol=2e-2)

    # Single-step call (original module's forward signature) agrees with step 0.
    out0, h1 = jax.jit(rnn_step)(x_seq[0], h0, params)
    jax.block_until_ready((out0, h1))
    assert jnp.allclose(out0, out_seq[0], atol=2e-2, rtol=2e-2)

    print("KERNEL_OK")
</pallas_src>

<mosaic_0001>
module attributes {stable_mosaic.version = 11 : i64} {
  func.func @rnn_seq_kernel(%arg0: i32, %arg1: i32, %arg2: memref<1x8x64xbf16, #tpu.memory_space<vmem>>, %arg3: memref<8x128xf32, #tpu.memory_space<vmem>>, %arg4: memref<64x256xbf16, #tpu.memory_space<vmem>>, %arg5: memref<128x256xbf16, #tpu.memory_space<vmem>>, %arg6: memref<1x256xf32, #tpu.memory_space<vmem>>, %arg7: memref<128x128xbf16, #tpu.memory_space<vmem>>, %arg8: memref<128x128xbf16, #tpu.memory_space<vmem>>, %arg9: memref<1x128xf32, #tpu.memory_space<vmem>>, %arg10: memref<1x8x128xf32, #tpu.memory_space<vmem>>, %arg11: memref<8x128xf32, #tpu.memory_space<vmem>>, %arg12: memref<8x128xf32, #tpu.memory_space<vmem>>) attributes {dimension_semantics = [#tpu.dimension_semantics<parallel>, #tpu.dimension_semantics<arbitrary>], iteration_bounds = array<i64: 1, 8>, scalar_prefetch = 0 : i64, scratch_operands = 1 : i64, tpu.core_type = #tpu.core_type<tc>, window_params = [{transform_indices = @transform_0, window_bounds = array<i64: 1, 8, 64>}, {transform_indices = @transform_1, window_bounds = array<i64: 8, 128>}, {pipeline_mode = #tpu.pipeline_mode<synchronous>, transform_indices = @transform_2, window_bounds = array<i64: 64, 256>}, {pipeline_mode = #tpu.pipeline_mode<synchronous>, transform_indices = @transform_3, window_bounds = array<i64: 128, 256>}, {pipeline_mode = #tpu.pipeline_mode<synchronous>, transform_indices = @transform_4, window_bounds = array<i64: 1, 256>}, {pipeline_mode = #tpu.pipeline_mode<synchronous>, transform_indices = @transform_5, window_bounds = array<i64: 128, 128>}, {pipeline_mode = #tpu.pipeline_mode<synchronous>, transform_indices = @transform_6, window_bounds = array<i64: 128, 128>}, {pipeline_mode = #tpu.pipeline_mode<synchronous>, transform_indices = @transform_7, window_bounds = array<i64: 1, 128>}, {transform_indices = @transform_8, window_bounds = array<i64: 1, 8, 128>}, {transform_indices = @transform_9, window_bounds = array<i64: 8, 128>}]} {
    %c0_i32 = arith.constant 0 : i32
    %0 = arith.cmpi eq, %arg1, %c0_i32 : i32
    %1 = arith.extui %0 : i1 to i32
    %c0_i32_0 = arith.constant 0 : i32
    %2 = arith.cmpi ne, %1, %c0_i32_0 : i32
    scf.if %2 {
      %c0_29 = arith.constant 0 : index
      %c0_30 = arith.constant 0 : index
      %43 = vector.load %arg3[%c0_29, %c0_30] : memref<8x128xf32, #tpu.memory_space<vmem>>, vector<8x128xf32>
      %c0_31 = arith.constant 0 : index
      %c0_32 = arith.constant 0 : index
      %44 = vector.load %arg12[%c0_31, %c0_32] : memref<8x128xf32, #tpu.memory_space<vmem>>, vector<8x128xf32>
      tpu.vector_store %arg12[%c0_31, %c0_32], %43 {strides = array<i32>} : memref<8x128xf32, #tpu.memory_space<vmem>>, vector<8x128xf32>,
    } else {
    }
    %c0 = arith.constant 0 : index
    %c0_1 = arith.constant 0 : index
    %c0_2 = arith.constant 0 : index
    %3 = vector.load %arg2[%c0, %c0_1, %c0_2] : memref<1x8x64xbf16, #tpu.memory_space<vmem>>, vector<1x8x64xbf16>
    %4 = vector.shape_cast %3 : vector<1x8x64xbf16> to vector<8x64xbf16>
    %c0_3 = arith.constant 0 : index
    %c0_4 = arith.constant 0 : index
    %5 = vector.load %arg12[%c0_3, %c0_4] : memref<8x128xf32, #tpu.memory_space<vmem>>, vector<8x128xf32>
    %6 = arith.truncf %5 : vector<8x128xf32> to vector<8x128xbf16>
    %c0_5 = arith.constant 0 : index
    %c0_6 = arith.constant 0 : index
    %7 = vector.load %arg4[%c0_5, %c0_6] : memref<64x256xbf16, #tpu.memory_space<vmem>>, vector<64x256xbf16>
    %cst = arith.constant dense<0.000000e+00> : vector<8x256xf32>
    %8 = tpu.matmul %4, %7, %cst {dimension_numbers = #tpu.dot_dimension_numbers<[1], [0], [0], [1], [0, 0, 1, 1], [], []>} : vector<8x64xbf16>, vector<64x256xbf16>, vector<8x256xf32> -> vector<8x256xf32>
    %c0_7 = arith.constant 0 : index
    %c0_8 = arith.constant 0 : index
    %9 = vector.load %arg5[%c0_7, %c0_8] : memref<128x256xbf16, #tpu.memory_space<vmem>>, vector<128x256xbf16>
    %cst_9 = arith.constant dense<0.000000e+00> : vector<8x256xf32>
    %10 = tpu.matmul %6, %9, %cst_9 {dimension_numbers = #tpu.dot_dimension_numbers<[1], [0], [0], [1], [0, 0, 1, 1], [], []>} : vector<8x128xbf16>, vector<128x256xbf16>, vector<8x256xf32> -> vector<8x256xf32>
    %11 = arith.addf %8, %10 : vector<8x256xf32>
    %c0_10 = arith.constant 0 : index
    %c0_11 = arith.constant 0 : index
    %12 = vector.load %arg6[%c0_10, %c0_11] : memref<1x256xf32, #tpu.memory_space<vmem>>, vector<1x256xf32>
    %13 = vector.broadcast %12 : vector<1x256xf32> to vector<8x256xf32>
    %14 = arith.addf %11, %13 : vector<8x256xf32>
    %15 = vector.extract_strided_slice %14 {offsets = [0, 0], sizes = [8, 128], strides = [1, 1]} : vector<8x256xf32> to vector<8x128xf32>
    %16 = vector.extract_strided_slice %14 {offsets = [0, 128], sizes = [8, 128], strides = [1, 1]} : vector<8x256xf32> to vector<8x128xf32>
    %17 = arith.truncf %15 : vector<8x128xf32> to vector<8x128xbf16>
    %c0_12 = arith.constant 0 : index
    %c0_13 = arith.constant 0 : index
    %18 = vector.load %arg7[%c0_12, %c0_13] : memref<128x128xbf16, #tpu.memory_space<vmem>>, vector<128x128xbf16>
    %cst_14 = arith.constant dense<0.000000e+00> : vector<8x128xf32>
    %19 = tpu.matmul %17, %18, %cst_14 {dimension_numbers = #tpu.dot_dimension_numbers<[1], [0], [0], [1], [0, 0, 1, 1], [], []>} : vector<8x128xbf16>, vector<128x128xbf16>, vector<8x128xf32> -> vector<8x128xf32>
    %20 = arith.truncf %16 : vector<8x128xf32> to vector<8x128xbf16>
    %c0_15 = arith.constant 0 : index
    %c0_16 = arith.constant 0 : index
    %21 = vector.load %arg8[%c0_15, %c0_16] : memref<128x128xbf16, #tpu.memory_space<vmem>>, vector<128x128xbf16>
    %cst_17 = arith.constant dense<0.000000e+00> : vector<8x128xf32>
    %22 = tpu.matmul %20, %21, %cst_17 {dimension_numbers = #tpu.dot_dimension_numbers<[1], [0], [0], [1], [0, 0, 1, 1], [], []>} : vector<8x128xbf16>, vector<128x128xbf16>, vector<8x128xf32> -> vector<8x128xf32>
    %23 = arith.addf %19, %22 : vector<8x128xf32>
    %c0_18 = arith.constant 0 : index
    %c0_19 = arith.constant 0 : index
    %24 = vector.load %arg9[%c0_18, %c0_19] : memref<1x128xf32, #tpu.memory_space<vmem>>, vector<1x128xf32>
    %25 = vector.broadcast %24 : vector<1x128xf32> to vector<8x128xf32>
    %26 = arith.addf %23, %25 : vector<8x128xf32>
    %cst_20 = arith.constant dense<0xFF800000> : vector<8xf32>
    %27 = vector.multi_reduction <maximumf>, %26, %cst_20 [1] : vector<8x128xf32> to vector<8xf32>
    %28 = vector.shape_cast %27 : vector<8xf32> to vector<8x1xf32>
    %29 = vector.broadcast %28 : vector<8x1xf32> to vector<8x128xf32>
    %30 = arith.subf %26, %29 : vector<8x128xf32>
    %31 = math.exp %30 : vector<8x128xf32>
    %cst_21 = arith.constant dense<0.000000e+00> : vector<8xf32>
    %32 = vector.multi_reduction <add>, %31, %cst_21 [1] : vector<8x128xf32> to vector<8xf32>
    %33 = vector.shape_cast %32 : vector<8xf32> to vector<8x1xf32>
    %34 = math.log %33 : vector<8x1xf32>
    %35 = arith.addf %34, %28 : vector<8x1xf32>
    %36 = vector.broadcast %35 : vector<8x1xf32> to vector<8x128xf32>
    %37 = arith.subf %26, %36 : vector<8x128xf32>
    %c0_22 = arith.constant 0 : index
    %c0_23 = arith.constant 0 : index
    %c0_24 = arith.constant 0 : index
    %38 = vector.load %arg10[%c0_22, %c0_23, %c0_24] : memref<1x8x128xf32, #tpu.memory_space<vmem>>, vector<1x8x128xf32>
    %39 = vector.shape_cast %38 : vector<1x8x128xf32> to vector<8x128xf32>
    %40 = vector.shape_cast %37 : vector<8x128xf32> to vector<1x8x128xf32>
    tpu.vector_store %arg10[%c0_22, %c0_23, %c0_24], %40 {strides = array<i32>} : memref<1x8x128xf32, #tpu.memory_space<vmem>>, vector<1x8x128xf32>,
    %c0_25 = arith.constant 0 : index
    %c0_26 = arith.constant 0 : index
    %41 = vector.load %arg12[%c0_25, %c0_26] : memref<8x128xf32, #tpu.memory_space<vmem>>, vector<8x128xf32>
    tpu.vector_store %arg12[%c0_25, %c0_26], %15 {strides = array<i32>} : memref<8x128xf32, #tpu.memory_space<vmem>>, vector<8x128xf32>,
    %c0_27 = arith.constant 0 : index
    %c0_28 = arith.constant 0 : index
    %42 = vector.load %arg11[%c0_27, %c0_28] : memref<8x128xf32, #tpu.memory_space<vmem>>, vector<8x128xf32>
    tpu.vector_store %arg11[%c0_27, %c0_28], %15 {strides = array<i32>} : memref<8x128xf32, #tpu.memory_space<vmem>>, vector<8x128xf32>,
    return
  }
  func.func @transform_0(%arg0: i32, %arg1: i32) -> (i32, i32, i32) {
    %c0_i32 = arith.constant 0 : i32
    %c0_i32_0 = arith.constant 0 : i32
    return %arg1, %arg0, %c0_i32 : i32, i32, i32
  }
  func.func @transform_1(%arg0: i32, %arg1: i32) -> (i32, i32) {
    %c0_i32 = arith.constant 0 : i32
    %c0_i32_0 = arith.constant 0 : i32
    return %arg0, %c0_i32 : i32, i32
  }
  func.func @transform_2(%arg0: i32, %arg1: i32) -> (i32, i32) {
    %c0_i32 = arith.constant 0 : i32
    %c0_i32_0 = arith.constant 0 : i32
    %c0_i32_1 = arith.constant 0 : i32
    return %c0_i32, %c0_i32_0 : i32, i32
  }
  func.func @transform_3(%arg0: i32, %arg1: i32) -> (i32, i32) {
    %c0_i32 = arith.constant 0 : i32
    %c0_i32_0 = arith.constant 0 : i32
    %c0_i32_1 = arith.constant 0 : i32
    return %c0_i32, %c0_i32_0 : i32, i32
  }
  func.func @transform_4(%arg0: i32, %arg1: i32) -> (i32, i32) {
    %c0_i32 = arith.constant 0 : i32
    %c0_i32_0 = arith.constant 0 : i32
    %c0_i32_1 = arith.constant 0 : i32
    return %c0_i32, %c0_i32_0 : i32, i32
  }
  func.func @transform_5(%arg0: i32, %arg1: i32) -> (i32, i32) {
    %c0_i32 = arith.constant 0 : i32
    %c0_i32_0 = arith.constant 0 : i32
    %c0_i32_1 = arith.constant 0 : i32
    return %c0_i32, %c0_i32_0 : i32, i32
  }
  func.func @transform_6(%arg0: i32, %arg1: i32) -> (i32, i32) {
    %c0_i32 = arith.constant 0 : i32
    %c0_i32_0 = arith.constant 0 : i32
    %c0_i32_1 = arith.constant 0 : i32
    return %c0_i32, %c0_i32_0 : i32, i32
  }
  func.func @transform_7(%arg0: i32, %arg1: i32) -> (i32, i32) {
    %c0_i32 = arith.constant 0 : i32
    %c0_i32_0 = arith.constant 0 : i32
    %c0_i32_1 = arith.constant 0 : i32
    return %c0_i32, %c0_i32_0 : i32, i32
  }
  func.func @transform_8(%arg0: i32, %arg1: i32) -> (i32, i32, i32) {
    %c0_i32 = arith.constant 0 : i32
    %c0_i32_0 = arith.constant 0 : i32
    return %arg1, %arg0, %c0_i32 : i32, i32, i32
  }
  func.func @transform_9(%arg0: i32, %arg1: i32) -> (i32, i32) {
    %c0_i32 = arith.constant 0 : i32
    %c0_i32_0 = arith.constant 0 : i32
    return %arg0, %c0_i32 : i32, i32
  }
}

</mosaic_0001>

<llo_original>
// kernel: rnn_forward.1
$region0: #{rnn_forward.1}
  #allocation0 [shape = 'u32[]', space=smem, size = 0x4, offset = 0x4, fixed_abs, tag = 'smem constant byte address 0x4 - core index']
  #allocation1 [shape = 'u32[144,128]{1,0:T(1,128)}', space=vmem, size = 0x12000, scoped, tag = 'internal scratch']
  #allocation2 [shape = 'f32[8,128]{1,0:T(8,128)}', space=vmem, size = 0x1000, scoped, tag = 'scratch operand']
  %s0 = inlined_call_operand.vmem [shape: bf16[8,8,64], index: 0, kind: input, shape index: {}]
  %s1 = inlined_call_operand.vmem [shape: f32[8,128], index: 1, kind: input, shape index: {}]
  %s2 = inlined_call_operand.vmem [shape: bf16[64,256], index: 2, kind: input, shape index: {}]
  %s3 = inlined_call_operand.hbm [shape: bf16[128,256], index: 3, kind: input, shape index: {}]
  %s4 = inlined_call_operand.vmem [shape: f32[1,256], index: 4, kind: input, shape index: {}]
  %s5 = inlined_call_operand.hbm [shape: bf16[128,128], index: 5, kind: input, shape index: {}]
  %s6 = inlined_call_operand.hbm [shape: bf16[128,128], index: 6, kind: input, shape index: {}]
  %s7 = inlined_call_operand.vmem [shape: f32[1,128], index: 7, kind: input, shape index: {}]
  %s8 = inlined_call_operand.hbm [shape: f32[8,8,128], index: 8, kind: output, shape index: {0}]
  %s9 = inlined_call_operand.hbm [shape: f32[8,128], index: 9, kind: output, shape index: {1}]
  %10 = xla_tuple %s8, %s9
  %s11 = sld [smem:[#allocation0]]
  $region89: #{rnn_forward.1} parent=0
    _
  %s13 = ssub.s32 1, %s11
  %s14 = scalar_select 0, %s13, %s11
  $region1: #{rnn_forward.1} parent=0
    #allocation3 [shape = 'u8[65536]{0}', space=vmem, size = 0x10000, scoped, tag = 'input window, operand 3, single buffered']
    #allocation4 [shape = 's32[2]{0}', space=sflag, size = 0x8, scoped, tag = 'scoped memory for rnn_forward.1']
    #allocation5 [shape = 's32[2]{0}', space=sflag, size = 0x8, scoped, tag = 'scoped memory for rnn_forward.1']
    #allocation6 [shape = 'u8[32768]{0}', space=vmem, size = 0x8000, scoped, tag = 'input window, operand 5, single buffered']
    #allocation7 [shape = 's32[1]{0}', space=sflag, size = 0x4, scoped, tag = 'scoped memory for rnn_forward.1']
    #allocation8 [shape = 'u8[32768]{0}', space=vmem, size = 0x8000, scoped, tag = 'input window, operand 6, single buffered']
    #allocation9 [shape = 'u8[8192]{0}', space=vmem, size = 0x2000, scoped, tag = 'output window, operand 0']
    #allocation10 [shape = 'u8[4096]{0}', space=vmem, size = 0x1000, scoped, tag = 'output window, operand 1, single buffered']
    #allocation11 [shape = 's32[1]{0}', space=sflag, size = 0x4, scoped, tag = 'scoped memory for rnn_forward.1']
    %15 = vsyncpa [#allocation4], 0
    %16 = vsyncpa [#allocation7], 0
    %17 = vsyncpa [#allocation5], 0
    %s18 = scalar_lea.sflag [#allocation5], 1
    %19 = vsyncpa %s18, 0
    %20 = vsyncpa [#allocation11], 0
    loop: start=0, step=1, limit=10
    $region2: #{rnn_forward.1} parent=1 // loop_pre_header
      _
    $region3: #{rnn_forward.1} parent=1 // loop_header
      %s22 = sphi 0, %s26
      %p23 = scmp.ge.s32.totalorder %s22, 10
      %s29 = sphi 0, %s41
      %s30 = sphi 0, %s37
      %s31 = sphi 0, %s29
      %s32 = sphi 0, %s30
      %s33 = sphi 0, %s31
      %s34 = sphi 0, %s32
      %s46 = sphi 0, %s48
      %s49 = sphi 0, %s46
      %s50 = sphi 0, %s49
      %s66 = sphi 0, %s50
      %s72 = sphi 0, %s74
      %s75 = sphi 0, %s72
      %s76 = sphi 0, %s75
      %s92 = sphi 0, %s76
      %s96 = sphi 0, %s96
      %s98 = sphi 0, %s96
      %s99 = sphi 0, %s98
      %s113 = sphi 0, %s99
      %s117 = sphi 0, %s117
      %s119 = sphi 0, %s117
      %s120 = sphi 0, %s119
      %s134 = sphi 0, %s120
      %s138 = sphi 0, %s138
      %s140 = sphi 0, %s138
      %s141 = sphi 0, %s140
      %s155 = sphi 0, %s141
      %s159 = sphi 0, %s159
      %s161 = sphi 0, %s159
      %s162 = sphi 0, %s161
      %s176 = sphi 0, %s162
      %s180 = sphi 0, %s180
      %s182 = sphi 0, %s180
      %s183 = sphi 0, %s182
      %s197 = sphi 0, %s183
      %s201 = sphi 0, %s201
      %s203 = sphi 0, %s201
      %s204 = sphi 0, %s203
      %s218 = sphi 0, %s204
      %s226 = sphi 0, %s228
      %s229 = sphi 0, %s226
      %s230 = sphi 0, %s229
      %s246 = sphi 0, %s230
      %s252 = sphi 0, %s254
      %s255 = sphi 0, %s252
      %s256 = sphi 0, %s255
      %s272 = sphi 0, %s256
    $region4: #{rnn_forward.1} parent=1 // loop_header_branch
      %25 = sbr.rel (%p23) target = $region8
    $region5: #{rnn_forward.1} parent=1 // loop_body
      %s27 = ssub.s32 %s22, 1
      %s28 = ssub.s32 %s22, 2
      %s35 = sadd.s32 1, %s30
      %p36 = scmp.ge.s32.totalorder %s35, 8
      %s37 = scalar_select %p36, 0, %s35
      %s38 = sadd.s32 1, %s29
      %s39 = scalar_select %p36, %s38, %s29
      %p40 = scmp.ge.s32.totalorder %s39, 1
      %s41 = scalar_select %p40, 0, %s39
      %s42 = ssub.s32 %s30, %s37
      %s43 = ssub.s32 %s29, %s41
      %s44 = sor.u32 %s42, %s43
      %p45 = scmp.eq.s32.totalorder %s44, 0
      %s47 = sadd.s32 %s46, 1
      %s48 = scalar_select %p45, %s46, %s47
      %p51 = pneg %p45
      %p52 = scmp.eq.s32.totalorder %s22, 7
      %p53 = por %p51, %p52
      %p54 = scmp.ne.s32.totalorder %s46, %s49
      %p55 = scmp.eq.s32.totalorder %s22, 0
      %p56 = por %p54, %p55
      %p57 = scmp.ne.s32.totalorder %s46, %s49
      %p58 = scmp.eq.s32.totalorder %s27, 7
      %p59 = por %p57, %p58
      %p60 = scmp.ne.s32.totalorder %s49, %s50
      %p61 = scmp.eq.s32.totalorder %s27, 0
      %p62 = por %p60, %p61
      %p63 = scmp.ne.s32.totalorder %s49, %s50
      %p64 = scmp.eq.s32.totalorder %s28, 7
      %p65 = por %p63, %p64
      %p67 = scmp.ne.s32.totalorder %s50, %s66
      %p68 = scmp.eq.s32.totalorder %s28, 0
      %p69 = por %p67, %p68
      %s70 = ssub.s32 %s29, %s41
      %p71 = scmp.eq.s32.totalorder %s70, 0
      %s73 = sadd.s32 %s72, 1
      %s74 = scalar_select %p71, %s72, %s73
      %p77 = pneg %p71
      %p78 = scmp.eq.s32.totalorder %s22, 7
      %p79 = por %p77, %p78
      %p80 = scmp.ne.s32.totalorder %s72, %s75
      %p81 = scmp.eq.s32.totalorder %s22, 0
      %p82 = por %p80, %p81
      %p83 = scmp.ne.s32.totalorder %s72, %s75
      %p84 = scmp.eq.s32.totalorder %s27, 7
      %p85 = por %p83, %p84
      %p86 = scmp.ne.s32.totalorder %s75, %s76
      %p87 = scmp.eq.s32.totalorder %s27, 0
      %p88 = por %p86, %p87
      %p89 = scmp.ne.s32.totalorder %s75, %s76
      %p90 = scmp.eq.s32.totalorder %s28, 7
      %p91 = por %p89, %p90
      %p93 = scmp.ne.s32.totalorder %s76, %s92
      %p94 = scmp.eq.s32.totalorder %s28, 0
      %p95 = por %p93, %p94
      %s97 = sadd.s32 %s96, 1
      %p100 = scmp.eq.s32.totalorder %s22, 7
      %p101 = scmp.ne.s32.totalorder %s96, %s98
      %p102 = scmp.eq.s32.totalorder %s22, 0
      %p103 = por %p101, %p102
      %p104 = scmp.ne.s32.totalorder %s96, %s98
      %p105 = scmp.eq.s32.totalorder %s27, 7
      %p106 = por %p104, %p105
      %p107 = scmp.ne.s32.totalorder %s98, %s99
      %p108 = scmp.eq.s32.totalorder %s27, 0
      %p109 = por %p107, %p108
      %p110 = scmp.ne.s32.totalorder %s98, %s99
      %p111 = scmp.eq.s32.totalorder %s28, 7
      %p112 = por %p110, %p111
      %p114 = scmp.ne.s32.totalorder %s99, %s113
      %p115 = scmp.eq.s32.totalorder %s28, 0
      %p116 = por %p114, %p115
      %s118 = sadd.s32 %s117, 1
      %p121 = scmp.eq.s32.totalorder %s22, 7
      %p122 = scmp.ne.s32.totalorder %s117, %s119
      %p123 = scmp.eq.s32.totalorder %s22, 0
      %p124 = por %p122, %p123
      %p125 = scmp.ne.s32.totalorder %s117, %s119
      %p126 = scmp.eq.s32.totalorder %s27, 7
      %p127 = por %p125, %p126
      %p128 = scmp.ne.s32.totalorder %s119, %s120
      %p129 = scmp.eq.s32.totalorder %s27, 0
      %p130 = por %p128, %p129
      %p131 = scmp.ne.s32.totalorder %s119, %s120
      %p132 = scmp.eq.s32.totalorder %s28, 7
      %p133 = por %p131, %p132
      %p135 = scmp.ne.s32.totalorder %s120, %s134
      %p136 = scmp.eq.s32.totalorder %s28, 0
      %p137 = por %p135, %p136
      %s139 = sadd.s32 %s138, 1
      %p142 = scmp.eq.s32.totalorder %s22, 7
      %p143 = scmp.ne.s32.totalorder %s138, %s140
      %p144 = scmp.eq.s32.totalorder %s22, 0
      %p145 = por %p143, %p144
      %p146 = scmp.ne.s32.totalorder %s138, %s140
      %p147 = scmp.eq.s32.totalorder %s27, 7
      %p148 = por %p146, %p147
      %p149 = scmp.ne.s32.totalorder %s140, %s141
      %p150 = scmp.eq.s32.totalorder %s27, 0
      %p151 = por %p149, %p150
      %p152 = scmp.ne.s32.totalorder %s140, %s141
      %p153 = scmp.eq.s32.totalorder %s28, 7
      %p154 = por %p152, %p153
      %p156 = scmp.ne.s32.totalorder %s141, %s155
      %p157 = scmp.eq.s32.totalorder %s28, 0
      %p158 = por %p156, %p157
      %s160 = sadd.s32 %s159, 1
      %p163 = scmp.eq.s32.totalorder %s22, 7
      %p164 = scmp.ne.s32.totalorder %s159, %s161
      %p165 = scmp.eq.s32.totalorder %s22, 0
      %p166 = por %p164, %p165
      %p167 = scmp.ne.s32.totalorder %s159, %s161
      %p168 = scmp.eq.s32.totalorder %s27, 7
      %p169 = por %p167, %p168
      %p170 = scmp.ne.s32.totalorder %s161, %s162
      %p171 = scmp.eq.s32.totalorder %s27, 0
      %p172 = por %p170, %p171
      %p173 = scmp.ne.s32.totalorder %s161, %s162
      %p174 = scmp.eq.s32.totalorder %s28, 7
      %p175 = por %p173, %p174
      %p177 = scmp.ne.s32.totalorder %s162, %s176
      %p178 = scmp.eq.s32.totalorder %s28, 0
      %p179 = por %p177, %p178
      %s181 = sadd.s32 %s180, 1
      %p184 = scmp.eq.s32.totalorder %s22, 7
      %p185 = scmp.ne.s32.totalorder %s180, %s182
      %p186 = scmp.eq.s32.totalorder %s22, 0
      %p187 = por %p185, %p186
      %p188 = scmp.ne.s32.totalorder %s180, %s182
      %p189 = scmp.eq.s32.totalorder %s27, 7
      %p190 = por %p188, %p189
      %p191 = scmp.ne.s32.totalorder %s182, %s183
      %p192 = scmp.eq.s32.totalorder %s27, 0
      %p193 = por %p191, %p192
      %p194 = scmp.ne.s32.totalorder %s182, %s183
      %p195 = scmp.eq.s32.totalorder %s28, 7
      %p196 = por %p194, %p195
      %p198 = scmp.ne.s32.totalorder %s183, %s197
      %p199 = scmp.eq.s32.totalorder %s28, 0
      %p200 = por %p198, %p199
      %s202 = sadd.s32 %s201, 1
      %p205 = scmp.eq.s32.totalorder %s22, 7
      %p206 = scmp.ne.s32.totalorder %s201, %s203
      %p207 = scmp.eq.s32.totalorder %s22, 0
      %p208 = por %p206, %p207
      %p209 = scmp.ne.s32.totalorder %s201, %s203
      %p210 = scmp.eq.s32.totalorder %s27, 7
      %p211 = por %p209, %p210
      %p212 = scmp.ne.s32.totalorder %s203, %s204
      %p213 = scmp.eq.s32.totalorder %s27, 0
      %p214 = por %p212, %p213
      %p215 = scmp.ne.s32.totalorder %s203, %s204
      %p216 = scmp.eq.s32.totalorder %s28, 7
      %p217 = por %p215, %p216
      %p219 = scmp.ne.s32.totalorder %s204, %s218
      %p220 = scmp.eq.s32.totalorder %s28, 0
      %p221 = por %p219, %p220
      %s222 = ssub.s32 %s30, %s37
      %s223 = ssub.s32 %s29, %s41
      %s224 = sor.u32 %s222, %s223
      %p225 = scmp.eq.s32.totalorder %s224, 0
      %s227 = sadd.s32 %s226, 1
      %s228 = scalar_select %p225, %s226, %s227
      %p231 = pneg %p225
      %p232 = scmp.eq.s32.totalorder %s22, 7
      %p233 = por %p231, %p232
      %p234 = scmp.ne.s32.totalorder %s226, %s229
      %p235 = scmp.eq.s32.totalorder %s22, 0
      %p236 = por %p234, %p235
      %p237 = scmp.ne.s32.totalorder %s226, %s229
      %p238 = scmp.eq.s32.totalorder %s27, 7
      %p239 = por %p237, %p238
      %p240 = scmp.ne.s32.totalorder %s229, %s230
      %p241 = scmp.eq.s32.totalorder %s27, 0
      %p242 = por %p240, %p241
      %p243 = scmp.ne.s32.totalorder %s229, %s230
      %p244 = scmp.eq.s32.totalorder %s28, 7
      %p245 = por %p243, %p244
      %p247 = scmp.ne.s32.totalorder %s230, %s246
      %p248 = scmp.eq.s32.totalorder %s28, 0
      %p249 = por %p247, %p248
      %s250 = ssub.s32 %s29, %s41
      %p251 = scmp.eq.s32.totalorder %s250, 0
      %s253 = sadd.s32 %s252, 1
      %s254 = scalar_select %p251, %s252, %s253
      %p257 = pneg %p251
      %p258 = scmp.eq.s32.totalorder %s22, 7
      %p259 = por %p257, %p258
      %p260 = scmp.ne.s32.totalorder %s252, %s255
      %p261 = scmp.eq.s32.totalorder %s22, 0
      %p262 = por %p260, %p261
      %p263 = scmp.ne.s32.totalorder %s252, %s255
      %p264 = scmp.eq.s32.totalorder %s27, 7
      %p265 = por %p263, %p264
      %p266 = scmp.ne.s32.totalorder %s255, %s256
      %p267 = scmp.eq.s32.totalorder %s27, 0
      %p268 = por %p266, %p267
      %p269 = scmp.ne.s32.totalorder %s255, %s256
      %p270 = scmp.eq.s32.totalorder %s28, 7
      %p271 = por %p269, %p270
      %p273 = scmp.ne.s32.totalorder %s256, %s272
      %p274 = scmp.eq.s32.totalorder %s28, 0
      %p275 = por %p273, %p274
      %p276 = scmp.le.s32.totalorder 1, %s22
      %p277 = scmp.lt.s32.totalorder %s22, 9
      %p278 = pnand %p276, %p277
      %p279 = pneg %p278
      // Predicated region
      $region9: #{rnn_forward.1} parent=5 // pred_check
        _
      $region10: #{rnn_forward.1} parent=5 // pred_check_branch
        %281 = sbr.rel (%p278) target = $region12
      $region11: #{rnn_forward.1} parent=5 // pred_region
        %s282 = ssub.s32 %s22, 1
        // Predicated region
        $region13: #{rnn_forward.1} parent=11 // pred_check
          %p283 = pneg %p88
        $region14: #{rnn_forward.1} parent=11 // pred_check_branch
          %285 = sbr.rel (%p283) target = $region16
        $region15: #{rnn_forward.1} parent=11 // pred_region
          %p286 = scmp.lt.s32.totalorder %s31, 0
          %s287 = scalar_select %p286, %s31, 0
          %s288 = smul.addr %s287, 8
          %s289 = scalar_lea.vmem %s1, %s288
        $region16: #{rnn_forward.1} parent=11 // pred_fallthru
          _
        // Predicated region
        $region17: #{rnn_forward.1} parent=11 // pred_check
          %p290 = pneg %p109
        $region18: #{rnn_forward.1} parent=11 // pred_check_branch
          %292 = sbr.rel (%p290) target = $region20
        $region19: #{rnn_forward.1} parent=11 // pred_region
          _
        $region20: #{rnn_forward.1} parent=11 // pred_fallthru
          _
        // Predicated region
        $region21: #{rnn_forward.1} parent=11 // pred_check
          %p293 = pneg %p130
        $region22: #{rnn_forward.1} parent=11 // pred_check_branch
          %295 = sbr.rel (%p293) target = $region24
        $region23: #{rnn_forward.1} parent=11 // pred_region
          %s297 = ssub.s32 2048, 2048
          %298 = vsyncadd [#allocation4], %s297
          %s299 = sshll.u32 [#allocation3], 4
          %s300 = int_to_ptr.vmem [resolvable:$true] %s299
          %305 = dma.hbm_to_vmem [thread:$0]  %s3, 2048, %s300, [#allocation4], 128, 128, 8
        $region24: #{rnn_forward.1} parent=11 // pred_fallthru
          _
        // Predicated region
        $region25: #{rnn_forward.1} parent=11 // pred_check
          %p306 = pneg %p151
        $region26: #{rnn_forward.1} parent=11 // pred_check_branch
          %308 = sbr.rel (%p306) target = $region28
        $region27: #{rnn_forward.1} parent=11 // pred_region
          _
        $region28: #{rnn_forward.1} parent=11 // pred_fallthru
          _
        // Predicated region
        $region29: #{rnn_forward.1} parent=11 // pred_check
          %p309 = pneg %p172
        $region30: #{rnn_forward.1} parent=11 // pred_check_branch
          %311 = sbr.rel (%p309) target = $region32
        $region31: #{rnn_forward.1} parent=11 // pred_region
          %s313 = ssub.s32 1024, 1024
          %314 = vsyncadd [#allocation7], %s313
          %s315 = sshll.u32 [#allocation6], 4
          %s316 = int_to_ptr.vmem [resolvable:$true] %s315
          %321 = dma.hbm_to_vmem [thread:$0]  %s5, 1024, %s316, [#allocation7], 64, 64, 4
        $region32: #{rnn_forward.1} parent=11 // pred_fallthru
          _
        // Predicated region
        $region33: #{rnn_forward.1} parent=11 // pred_check
          %p322 = pneg %p193
        $region34: #{rnn_forward.1} parent=11 // pred_check_branch
          %324 = sbr.rel (%p322) target = $region36
        $region35: #{rnn_forward.1} parent=11 // pred_region
          %s326 = ssub.s32 1024, 1024
          %327 = vsyncadd [#allocation7], %s326
          %s328 = sshll.u32 [#allocation8], 4
          %s329 = int_to_ptr.vmem [resolvable:$true] %s328
          %334 = dma.hbm_to_vmem [thread:$0]  %s6, 1024, %s329, [#allocation7], 64, 64, 4
        $region36: #{rnn_forward.1} parent=11 // pred_fallthru
          _
        // Predicated region
        $region37: #{rnn_forward.1} parent=11 // pred_check
          %p335 = pneg %p214
        $region38: #{rnn_forward.1} parent=11 // pred_check_branch
          %337 = sbr.rel (%p335) target = $region40
        $region39: #{rnn_forward.1} parent=11 // pred_region
          _
        $region40: #{rnn_forward.1} parent=11 // pred_fallthru
          _
      $region12: #{rnn_forward.1} parent=5 // pred_fallthru
        _
      %p338 = scmp.lt.s32.totalorder %s22, 8
      // Predicated region
      $region41: #{rnn_forward.1} parent=5 // pred_check
        %p339 = pneg %p338
      $region42: #{rnn_forward.1} parent=5 // pred_check_branch
        %341 = sbr.rel (%p339) target = $region44
      $region43: #{rnn_forward.1} parent=5 // pred_region
        // Predicated region
        $region45: #{rnn_forward.1} parent=43 // pred_check
          %p342 = pneg %p56
        $region46: #{rnn_forward.1} parent=43 // pred_check_branch
          %344 = sbr.rel (%p342) target = $region48
        $region47: #{rnn_forward.1} parent=43 // pred_region
          %p345 = scmp.lt.s32.totalorder %s30, 7
          %s346 = scalar_select %p345, %s30, 7
          %p347 = scmp.lt.s32.totalorder %s29, 0
          %s348 = scalar_select %p347, %s29, 0
          %s349 = sadd.s32 %s348, %s346
          %s350 = smul.addr %s349, 4
          %s351 = scalar_lea.vmem %s0, %s350
        $region48: #{rnn_forward.1} parent=43 // pred_fallthru
          _
      $region44: #{rnn_forward.1} parent=5 // pred_fallthru
        _
      %p352 = scmp.le.s32.totalorder 1, %s22
      %p353 = scmp.lt.s32.totalorder %s22, 9
      %p354 = pnand %p352, %p353
      %p355 = pneg %p354
      // Predicated region
      $region49: #{rnn_forward.1} parent=5 // pred_check
        _
      $region50: #{rnn_forward.1} parent=5 // pred_check_branch
        %357 = sbr.rel (%p354) target = $region52
      $region51: #{rnn_forward.1} parent=5 // pred_region
        %s358 = ssub.s32 %s22, 1
        // Predicated region
        $region53: #{rnn_forward.1} parent=51 // pred_check
          %p359 = pneg %p130
        $region54: #{rnn_forward.1} parent=51 // pred_check_branch
          %361 = sbr.rel (%p359) target = $region56
        $region55: #{rnn_forward.1} parent=51 // pred_region
          %362 = dma.done [#allocation4], 2048
        $region56: #{rnn_forward.1} parent=51 // pred_fallthru
          _
        // Predicated region
        $region57: #{rnn_forward.1} parent=51 // pred_check
          %p363 = pneg %p172
        $region58: #{rnn_forward.1} parent=51 // pred_check_branch
          %365 = sbr.rel (%p363) target = $region60
        $region59: #{rnn_forward.1} parent=51 // pred_region
          %366 = dma.done [#allocation7], 1024
        $region60: #{rnn_forward.1} parent=51 // pred_fallthru
          _
        // Predicated region
        $region61: #{rnn_forward.1} parent=51 // pred_check
          %p367 = pneg %p193
        $region62: #{rnn_forward.1} parent=51 // pred_check_branch
          %369 = sbr.rel (%p367) target = $region64
        $region63: #{rnn_forward.1} parent=51 // pred_region
          %370 = dma.done [#allocation7], 1024
        $region64: #{rnn_forward.1} parent=51 // pred_fallthru
          _
        %p371 = scmp.lt.s32.totalorder %s32, 7
        %s372 = scalar_select %p371, %s32, 7
        %p373 = scmp.lt.s32.totalorder %s31, 0
        %s374 = scalar_select %p373, %s31, 0
        %s375 = sadd.s32 %s374, %s372
        %s376 = smul.addr %s375, 4
        %s377 = scalar_lea.vmem %s0, %s376
        %p378 = pneg %p62
        %p379 = pneg %p59
        %p380 = scmp.lt.s32.totalorder %s31, 0
        %s381 = scalar_select %p380, %s31, 0
        %s382 = smul.addr %s381, 8
        %s383 = scalar_lea.vmem %s1, %s382
        %p384 = pneg %p88
        %p385 = pneg %p85
        %p386 = pneg %p109
        %p387 = pneg %p106
        %p388 = pneg %p130
        %p389 = pneg %p127
        %p390 = pneg %p151
        %p391 = pneg %p148
        %p392 = pneg %p172
        %p393 = pneg %p169
        %p394 = pneg %p193
        %p395 = pneg %p190
        %p396 = pneg %p214
        %p397 = pneg %p211
        %p398 = pneg %p242
        %p399 = pneg %p239
        %s400 = sand.u32 %s229, 1
        %s401 = scalar_lea.sflag [#allocation5], %s400
        %s402 = sand.u32 %s229, 1
        %s403 = smul.addr %s402, 8
        %s404 = scalar_lea.vmem [#allocation9], %s403
        %p405 = pneg %p268
        %p406 = pneg %p265
        %p407 = scmp.lt.s32.totalorder %s32, 7
        %s408 = scalar_select %p407, %s32, 7
        %p409 = scmp.lt.s32.totalorder %s31, 0
        %s410 = scalar_select %p409, %s31, 0
        %s411 = sadd.s32 %s410, %s408
        %s412 = smul.addr %s411, 4
        %s413 = scalar_lea.vmem %s0, %s412
        %p414 = scmp.lt.s32.totalorder %s31, 0
        %s415 = scalar_select %p414, %s31, 0
        %s416 = smul.addr %s415, 8
        %s417 = scalar_lea.vmem %s1, %s416
        %p419 = scmp.eq.s32.totalorder %s32, 0
        // Predicated region
        $region65: #{rnn_forward.1} parent=51 // pred_check
          %p420 = pneg %p419
        $region66: #{rnn_forward.1} parent=51 // pred_check_branch
          %422 = sbr.rel (%p420) target = $region68
        $region67: #{rnn_forward.1} parent=51 // pred_region
          %v423 = vld [vmem:[%s417] sm:$0xff]
          %424 = vst [vmem:[#allocation2] sm:$0xff] %v423
        $region68: #{rnn_forward.1} parent=51 // pred_fallthru
          _
        %v425 = vld [vmem:[%s413] sm:$0xf]
        %v426 = vld [vmem:[#allocation2] sm:$0xff]
        %v427 = vpack.c.bf16 %v426, %v426
        %v428 = vld [vmem:[%s2] sm:$0xff]
        %v429 = vld [vmem:[%s2 + $0x8] sm:$0xff]
        %v430 = vld [vmem:[%s2 + $0x10] sm:$0xff]
        %v431 = vld [vmem:[%s2 + $0x18] sm:$0xff]
        %v432 = vld [vmem:[%s2 + $0x20] sm:$0xff]
        %v433 = vld [vmem:[%s2 + $0x28] sm:$0xff]
        %v434 = vld [vmem:[%s2 + $0x30] sm:$0xff]
        %v435 = vld [vmem:[%s2 + $0x38] sm:$0xff]
        %v436 = vld [vmem:[#allocation3] sm:$0xff]
        %v437 = vld [vmem:[#allocation3 + $0x8] sm:$0xff]
        %v438 = vld [vmem:[#allocation3 + $0x10] sm:$0xff]
        %v439 = vld [vmem:[#allocation3 + $0x18] sm:$0xff]
        %v440 = vld [vmem:[#allocation3 + $0x20] sm:$0xff]
        %v441 = vld [vmem:[#allocation3 + $0x28] sm:$0xff]
        %v442 = vld [vmem:[#allocation3 + $0x30] sm:$0xff]
        %v443 = vld [vmem:[#allocation3 + $0x38] sm:$0xff]
        %v444 = vld [vmem:[#allocation3 + $0x40] sm:$0xff]
        %v445 = vld [vmem:[#allocation3 + $0x48] sm:$0xff]
        %v446 = vld [vmem:[#allocation3 + $0x50] sm:$0xff]
        %v447 = vld [vmem:[#allocation3 + $0x58] sm:$0xff]
        %v448 = vld [vmem:[#allocation3 + $0x60] sm:$0xff]
        %v449 = vld [vmem:[#allocation3 + $0x68] sm:$0xff]
        %v450 = vld [vmem:[#allocation3 + $0x70] sm:$0xff]
        %v451 = vld [vmem:[#allocation3 + $0x78] sm:$0xff]
        %v468 = vunpack.c.l.b16 %v436
        %v469 = vunpack.c.h.b16 %v436
        %v470 = vunpack.c.l.b16 %v437
        %v471 = vunpack.c.h.b16 %v437
        %v472 = vunpack.c.l.b16 %v438
        %v473 = vunpack.c.h.b16 %v438
        %v474 = vunpack.c.l.b16 %v439
        %v475 = vunpack.c.h.b16 %v439
        %v476 = vunpack.c.l.b16 %v440
        %v477 = vunpack.c.h.b16 %v440
        %v478 = vunpack.c.l.b16 %v441
        %v479 = vunpack.c.h.b16 %v441
        %v480 = vunpack.c.l.b16 %v442
        %v481 = vunpack.c.h.b16 %v442
        %v482 = vunpack.c.l.b16 %v443
        %v483 = vunpack.c.h.b16 %v443
        %v484 = vunpack.c.l.b16 %v444
        %v485 = vunpack.c.h.b16 %v444
        %v486 = vunpack.c.l.b16 %v445
        %v487 = vunpack.c.h.b16 %v445
        %v488 = vunpack.c.l.b16 %v446
        %v489 = vunpack.c.h.b16 %v446
        %v490 = vunpack.c.l.b16 %v447
        %v491 = vunpack.c.h.b16 %v447
        %v492 = vunpack.c.l.b16 %v448
        %v493 = vunpack.c.h.b16 %v448
        %v494 = vunpack.c.l.b16 %v449
        %v495 = vunpack.c.h.b16 %v449
        %v496 = vunpack.c.l.b16 %v450
        %v497 = vunpack.c.h.b16 %v450
        %v498 = vunpack.c.l.b16 %v451
        %v499 = vunpack.c.h.b16 %v451
        %v500 = vpack.c.b16 %v470, %v468
        %v501 = vpack.c.b16 %v471, %v469
        %v502 = vpack.c.b16 %v474, %v472
        %v503 = vpack.c.b16 %v475, %v473
        %v504 = vpack.c.b16 %v478, %v476
        %v505 = vpack.c.b16 %v479, %v477
        %v506 = vpack.c.b16 %v482, %v480
        %v507 = vpack.c.b16 %v483, %v481
        %v508 = vpack.c.b16 %v486, %v484
        %v509 = vpack.c.b16 %v487, %v485
        %v510 = vpack.c.b16 %v490, %v488
        %v511 = vpack.c.b16 %v491, %v489
        %v512 = vpack.c.b16 %v494, %v492
        %v513 = vpack.c.b16 %v495, %v493
        %v514 = vpack.c.b16 %v498, %v496
        %v515 = vpack.c.b16 %v499, %v497
        %532 = vmatprep.subr.bf16.mxu0 %v501
        %533 = vmatpush1.bf16.msra.mxu0 %v500
        %534 = vmatprep.subr.bf16.mxu0 %v503
        %535 = vmatpush1.bf16.msra.mxu0 %v502
        %536 = vmatprep.subr.bf16.mxu0 %v505
        %537 = vmatpush1.bf16.msra.mxu0 %v504
        %538 = vmatprep.subr.bf16.mxu0 %v507
        %539 = vmatpush1.bf16.msra.mxu0 %v506
        %540 = vmatprep.subr.bf16.mxu0 %v509
        %541 = vmatpush1.bf16.msra.mxu0 %v508
        %542 = vmatprep.subr.bf16.mxu0 %v511
        %543 = vmatpush1.bf16.msra.mxu0 %v510
        %544 = vmatprep.subr.bf16.mxu0 %v513
        %545 = vmatpush1.bf16.msra.mxu0 %v512
        %546 = vmatprep.subr.bf16.mxu0 %v515
        %547 = vmatpush1.bf16.msra.mxu0 %v514
        %548 = vmatprep.subr.bf16.mxu0 0
        %549 = vmatpush1.bf16.msra.mxu0 0
        %550 = vmatprep.subr.bf16.mxu0 0
        %551 = vmatpush1.bf16.msra.mxu0 0
        %552 = vmatprep.subr.bf16.mxu0 0
        %553 = vmatpush1.bf16.msra.mxu0 0
        %554 = vmatprep.subr.bf16.mxu0 0
        %555 = vmatpush1.bf16.msra.mxu0 0
        %556 = vmatprep.subr.bf16.mxu0 0
        %557 = vmatpush1.bf16.msra.mxu0 0
        %558 = vmatprep.subr.bf16.mxu0 0
        %559 = vmatpush1.bf16.msra.mxu0 0
        %560 = vmatprep.subr.bf16.mxu0 0
        %561 = vmatpush1.bf16.msra.mxu0 0
        %562 = vmatprep.subr.bf16.mxu0 0
        %563 = vmatpush1.bf16.msra.mxu0 0
        %564 = vmatprep.mubr.bf16.mxu0 0
        %565 = vmatmul.mubr.bf16.gmra.mrb[0].mxu0 %v427
        %v566 = vpop.f32.mrb[0].mxu0
        %v567 = vadd.f32 0.0, %v566
        %v568 = vpop.f32.mrb[0].mxu0
        %v569 = vadd.f32 0.0, %v568
        %v570 = vpop.f32.mrb[0].mxu0
        %v571 = vpop.f32.mrb[0].mxu0
        %572 = vdwg.mxu0
        %v581 = vunpack.c.l.b16 %v428
        %v582 = vunpack.c.h.b16 %v428
        %v583 = vunpack.c.l.b16 %v429
        %v584 = vunpack.c.h.b16 %v429
        %v585 = vunpack.c.l.b16 %v430
        %v586 = vunpack.c.h.b16 %v430
        %v587 = vunpack.c.l.b16 %v431
        %v588 = vunpack.c.h.b16 %v431
        %v589 = vunpack.c.l.b16 %v432
        %v590 = vunpack.c.h.b16 %v432
        %v591 = vunpack.c.l.b16 %v433
        %v592 = vunpack.c.h.b16 %v433
        %v593 = vunpack.c.l.b16 %v434
        %v594 = vunpack.c.h.b16 %v434
        %v595 = vunpack.c.l.b16 %v435
        %v596 = vunpack.c.h.b16 %v435
        %v597 = vpack.c.b16 %v583, %v581
        %v598 = vpack.c.b16 %v584, %v582
        %v599 = vpack.c.b16 %v587, %v585
        %v600 = vpack.c.b16 %v588, %v586
        %v601 = vpack.c.b16 %v591, %v589
        %v602 = vpack.c.b16 %v592, %v590
        %v603 = vpack.c.b16 %v595, %v593
        %v604 = vpack.c.b16 %v596, %v594
        %vm613 = vcmask 523264
        %v615 = vsel %vm613, %v425, 0
        %617 = vmatprep.subr.bf16.mxu0 %v598
        %618 = vmatpush1.bf16.msra.mxu0 %v597
        %619 = vmatprep.subr.bf16.mxu0 %v600
        %620 = vmatpush1.bf16.msra.mxu0 %v599
        %621 = vmatprep.subr.bf16.mxu0 %v602
        %622 = vmatpush1.bf16.msra.mxu0 %v601
        %623 = vmatprep.subr.bf16.mxu0 %v604
        %624 = vmatpush1.bf16.msra.mxu0 %v603
        %625 = vmatprep.subr.bf16.mxu0 0
        %626 = vmatpush1.bf16.msra.mxu0 0
        %627 = vmatprep.subr.bf16.mxu0 0
        %628 = vmatpush1.bf16.msra.mxu0 0
        %629 = vmatprep.subr.bf16.mxu0 0
        %630 = vmatpush1.bf16.msra.mxu0 0
        %631 = vmatprep.subr.bf16.mxu0 0
        %632 = vmatpush1.bf16.msra.mxu0 0
        %633 = vmatprep.subr.bf16.mxu0 0
        %634 = vmatpush1.bf16.msra.mxu0 0
        %635 = vmatprep.subr.bf16.mxu0 0
        %636 = vmatpush1.bf16.msra.mxu0 0
        %637 = vmatprep.subr.bf16.mxu0 0
        %638 = vmatpush1.bf16.msra.mxu0 0
        %639 = vmatprep.subr.bf16.mxu0 0
        %640 = vmatpush1.bf16.msra.mxu0 0
        %641 = vmatprep.subr.bf16.mxu0 0
        %642 = vmatpush1.bf16.msra.mxu0 0
        %643 = vmatprep.subr.bf16.mxu0 0
        %644 = vmatpush1.bf16.msra.mxu0 0
        %645 = vmatprep.subr.bf16.mxu0 0
        %646 = vmatpush1.bf16.msra.mxu0 0
        %647 = vmatprep.subr.bf16.mxu0 0
        %648 = vmatpush1.bf16.msra.mxu0 0
        %649 = vmatprep.mubr.bf16.mxu0 0
        %650 = vmatmul.mubr.bf16.gmra.mrb[0].mxu0 %v615
        %v651 = vpop.f32.mrb[0].mxu0
        %v652 = vadd.f32 %v567, %v651
        %v653 = vpop.f32.mrb[0].mxu0
        %v654 = vadd.f32 %v569, %v653
        %v655 = vpop.f32.mrb[0].mxu0
        %v656 = vpop.f32.mrb[0].mxu0
        %657 = vdwg.mxu0
        %v658 = vld [vmem:[%s4] sm:$0x3]
        %v660 = vlaneseq
        %v661 = vshrl.u32 %v660, 7
        %v662 = vsub.s32 0, %v661
        %v663 = vrot.slane %v658, %v662
        %v664 = vlaneseq
        %v665 = vshrl.u32 %v664, 7
        %v666 = vsub.s32 1, %v665
        %v667 = vrot.slane %v658, %v666
        %v670 = vadd.f32 %v652, %v663
        %v671 = vadd.f32 %v654, %v667
        %v672 = vpack.c.bf16 %v670, %v670
        %v673 = vld [vmem:[#allocation6] sm:$0xf]
        %v674 = vld [vmem:[#allocation6 + $0x4] sm:$0xf]
        %v675 = vld [vmem:[#allocation6 + $0x8] sm:$0xf]
        %v676 = vld [vmem:[#allocation6 + $0xc] sm:$0xf]
        %v677 = vld [vmem:[#allocation6 + $0x10] sm:$0xf]
        %v678 = vld [vmem:[#allocation6 + $0x14] sm:$0xf]
        %v679 = vld [vmem:[#allocation6 + $0x18] sm:$0xf]
        %v680 = vld [vmem:[#allocation6 + $0x1c] sm:$0xf]
        %v681 = vld [vmem:[#allocation6 + $0x20] sm:$0xf]
        %v682 = vld [vmem:[#allocation6 + $0x24] sm:$0xf]
        %v683 = vld [vmem:[#allocation6 + $0x28] sm:$0xf]
        %v684 = vld [vmem:[#allocation6 + $0x2c] sm:$0xf]
        %v685 = vld [vmem:[#allocation6 + $0x30] sm:$0xf]
        %v686 = vld [vmem:[#allocation6 + $0x34] sm:$0xf]
        %v687 = vld [vmem:[#allocation6 + $0x38] sm:$0xf]
        %v688 = vld [vmem:[#allocation6 + $0x3c] sm:$0xf]
        %v689 = vpack.c.bf16 %v671, %v671
        %v690 = vld [vmem:[#allocation8] sm:$0xf]
        %v691 = vld [vmem:[#allocation8 + $0x4] sm:$0xf]
        %v692 = vld [vmem:[#allocation8 + $0x8] sm:$0xf]
        %v693 = vld [vmem:[#allocation8 + $0xc] sm:$0xf]
        %v694 = vld [vmem:[#allocation8 + $0x10] sm:$0xf]
        %v695 = vld [vmem:[#allocation8 + $0x14] sm:$0xf]
        %v696 = vld [vmem:[#allocation8 + $0x18] sm:$0xf]
        %v697 = vld [vmem:[#allocation8 + $0x1c] sm:$0xf]
        %v698 = vld [vmem:[#allocation8 + $0x20] sm:$0xf]
        %v699 = vld [vmem:[#allocation8 + $0x24] sm:$0xf]
        %v700 = vld [vmem:[#allocation8 + $0x28] sm:$0xf]
        %v701 = vld [vmem:[#allocation8 + $0x2c] sm:$0xf]
        %v702 = vld [vmem:[#allocation8 + $0x30] sm:$0xf]
        %v703 = vld [vmem:[#allocation8 + $0x34] sm:$0xf]
        %v704 = vld [vmem:[#allocation8 + $0x38] sm:$0xf]
        %v705 = vld [vmem:[#allocation8 + $0x3c] sm:$0xf]
        %v722 = vunpack.c.l.b16 %v690
        %v723 = vunpack.c.l.b16 %v691
        %v724 = vunpack.c.l.b16 %v692
        %v725 = vunpack.c.l.b16 %v693
        %v726 = vunpack.c.l.b16 %v694
        %v727 = vunpack.c.l.b16 %v695
        %v728 = vunpack.c.l.b16 %v696
        %v729 = vunpack.c.l.b16 %v697
        %v730 = vunpack.c.l.b16 %v698
        %v731 = vunpack.c.l.b16 %v699
        %v732 = vunpack.c.l.b16 %v700
        %v733 = vunpack.c.l.b16 %v701
        %v734 = vunpack.c.l.b16 %v702
        %v735 = vunpack.c.l.b16 %v703
        %v736 = vunpack.c.l.b16 %v704
        %v737 = vunpack.c.l.b16 %v705
        %v738 = vpack.c.b16 %v723, %v722
        %v739 = vpack.c.b16 %v725, %v724
        %v740 = vpack.c.b16 %v727, %v726
        %v741 = vpack.c.b16 %v729, %v728
        %v742 = vpack.c.b16 %v731, %v730
        %v743 = vpack.c.b16 %v733, %v732
        %v744 = vpack.c.b16 %v735, %v734
        %v745 = vpack.c.b16 %v737, %v736
        %754 = vmatprep.subr.bf16.mxu0 0
        %755 = vmatpush1.bf16.msra.mxu0 %v738
        %756 = vmatprep.subr.bf16.mxu0 0
        %757 = vmatpush1.bf16.msra.mxu0 %v739
        %758 = vmatprep.subr.bf16.mxu0 0
        %759 = vmatpush1.bf16.msra.mxu0 %v740
        %760 = vmatprep.subr.bf16.mxu0 0
        %761 = vmatpush1.bf16.msra.mxu0 %v741
        %762 = vmatprep.subr.bf16.mxu0 0
        %763 = vmatpush1.bf16.msra.mxu0 %v742
        %764 = vmatprep.subr.bf16.mxu0 0
        %765 = vmatpush1.bf16.msra.mxu0 %v743
        %766 = vmatprep.subr.bf16.mxu0 0
        %767 = vmatpush1.bf16.msra.mxu0 %v744
        %768 = vmatprep.subr.bf16.mxu0 0
        %769 = vmatpush1.bf16.msra.mxu0 %v745
        %770 = vmatprep.subr.bf16.mxu0 0
        %771 = vmatpush1.bf16.msra.mxu0 0
        %772 = vmatprep.subr.bf16.mxu0 0
        %773 = vmatpush1.bf16.msra.mxu0 0
        %774 = vmatprep.subr.bf16.mxu0 0
        %775 = vmatpush1.bf16.msra.mxu0 0
        %776 = vmatprep.subr.bf16.mxu0 0
        %777 = vmatpush1.bf16.msra.mxu0 0
        %778 = vmatprep.subr.bf16.mxu0 0
        %779 = vmatpush1.bf16.msra.mxu0 0
        %780 = vmatprep.subr.bf16.mxu0 0
        %781 = vmatpush1.bf16.msra.mxu0 0
        %782 = vmatprep.subr.bf16.mxu0 0
        %783 = vmatpush1.bf16.msra.mxu0 0
        %784 = vmatprep.subr.bf16.mxu0 0
        %785 = vmatpush1.bf16.msra.mxu0 0
        %786 = vmatprep.mubr.bf16.mxu0 0
        %787 = vmatmul.mubr.bf16.gmra.mrb[0].mxu0 %v689
        %v788 = vpop.f32.mrb[0].mxu0
        %v789 = vadd.f32 0.0, %v788
        %v790 = vpop.f32.mrb[0].mxu0
        %v791 = vpop.f32.mrb[0].mxu0
        %v792 = vpop.f32.mrb[0].mxu0
        %793 = vdwg.mxu0
        %v810 = vunpack.c.l.b16 %v673
        %v811 = vunpack.c.l.b16 %v674
        %v812 = vunpack.c.l.b16 %v675
        %v813 = vunpack.c.l.b16 %v676
        %v814 = vunpack.c.l.b16 %v677
        %v815 = vunpack.c.l.b16 %v678
        %v816 = vunpack.c.l.b16 %v679
        %v817 = vunpack.c.l.b16 %v680
        %v818 = vunpack.c.l.b16 %v681
        %v819 = vunpack.c.l.b16 %v682
        %v820 = vunpack.c.l.b16 %v683
        %v821 = vunpack.c.l.b16 %v684
        %v822 = vunpack.c.l.b16 %v685
        %v823 = vunpack.c.l.b16 %v686
        %v824 = vunpack.c.l.b16 %v687
        %v825 = vunpack.c.l.b16 %v688
        %v826 = vpack.c.b16 %v811, %v810
        %v827 = vpack.c.b16 %v813, %v812
        %v828 = vpack.c.b16 %v815, %v814
        %v829 = vpack.c.b16 %v817, %v816
        %v830 = vpack.c.b16 %v819, %v818
        %v831 = vpack.c.b16 %v821, %v820
        %v832 = vpack.c.b16 %v823, %v822
        %v833 = vpack.c.b16 %v825, %v824
        %842 = vmatprep.subr.bf16.mxu0 0
        %843 = vmatpush1.bf16.msra.mxu0 %v826
        %844 = vmatprep.subr.bf16.mxu0 0
        %845 = vmatpush1.bf16.msra.mxu0 %v827
        %846 = vmatprep.subr.bf16.mxu0 0
        %847 = vmatpush1.bf16.msra.mxu0 %v828
        %848 = vmatprep.subr.bf16.mxu0 0
        %849 = vmatpush1.bf16.msra.mxu0 %v829
        %850 = vmatprep.subr.bf16.mxu0 0
        %851 = vmatpush1.bf16.msra.mxu0 %v830
        %852 = vmatprep.subr.bf16.mxu0 0
        %853 = vmatpush1.bf16.msra.mxu0 %v831
        %854 = vmatprep.subr.bf16.mxu0 0
        %855 = vmatpush1.bf16.msra.mxu0 %v832
        %856 = vmatprep.subr.bf16.mxu0 0
        %857 = vmatpush1.bf16.msra.mxu0 %v833
        %858 = vmatprep.subr.bf16.mxu0 0
        %859 = vmatpush1.bf16.msra.mxu0 0
        %860 = vmatprep.subr.bf16.mxu0 0
        %861 = vmatpush1.bf16.msra.mxu0 0
        %862 = vmatprep.subr.bf16.mxu0 0
        %863 = vmatpush1.bf16.msra.mxu0 0
        %864 = vmatprep.subr.bf16.mxu0 0
        %865 = vmatpush1.bf16.msra.mxu0 0
        %866 = vmatprep.subr.bf16.mxu0 0
        %867 = vmatpush1.bf16.msra.mxu0 0
        %868 = vmatprep.subr.bf16.mxu0 0
        %869 = vmatpush1.bf16.msra.mxu0 0
        %870 = vmatprep.subr.bf16.mxu0 0
        %871 = vmatpush1.bf16.msra.mxu0 0
        %872 = vmatprep.subr.bf16.mxu0 0
        %873 = vmatpush1.bf16.msra.mxu0 0
        %874 = vmatprep.mubr.bf16.mxu0 0
        %875 = vmatmul.mubr.bf16.gmra.mrb[0].mxu0 %v672
        %v876 = vpop.f32.mrb[0].mxu0
        %v877 = vadd.f32 %v789, %v876
        %v878 = vpop.f32.mrb[0].mxu0
        %v879 = vpop.f32.mrb[0].mxu0
        %v880 = vpop.f32.mrb[0].mxu0
        %881 = vdwg.mxu0
        %v882 = vld [vmem:[%s7] sm:$0x1]
        %v884 = vlaneseq
        %v885 = vshrl.u32 %v884, 7
        %v886 = vsub.s32 0, %v885
        %v887 = vrot.slane %v882, %v886
        %v889 = vadd.f32 %v877, %v887
        %890 = vmax.xlane.f32.xlu0 %v889
        %v891 = vpop.xlane.xlu0 %890
        %v892 = vsub.f32 %v889, %v891
        %v893 = vmul.f32 %v892, 1.442695
        %v894 = vpow.pop %v893
        %895 = vadd.xlane.f32.xlu0 %v894
        %v896 = vpop.xlane.xlu0 %895
        %v897 = vlog2.pop %v896
        %v898 = vmul.f32 %v897, 0.6931472
        %v899 = vadd.f32 %v898, %v891
        %v900 = vsub.f32 %v889, %v899
        %901 = vst [vmem:[%s404] sm:$0xff] %v900
        %902 = vst [vmem:[#allocation2] sm:$0xff] %v670
        %903 = vst [vmem:[#allocation10] sm:$0xff] %v670
        %s904 = sand.u32 %s229, 1
        %s905 = scalar_lea.sflag [#allocation5], %s904
        %s906 = sand.u32 %s229, 1
        %s907 = smul.addr %s906, 8
        %s908 = scalar_lea.vmem [#allocation9], %s907
        // Predicated region
        $region69: #{rnn_forward.1} parent=51 // pred_check
          %p909 = pneg %p239
        $region70: #{rnn_forward.1} parent=51 // pred_check_branch
          %911 = sbr.rel (%p909) target = $region72
        $region71: #{rnn_forward.1} parent=51 // pred_region
          %s913 = ssub.s32 128, 128
          %914 = vsyncadd %s905, %s913
          %s915 = sadd.s32 %s31, %s32
          %s916 = smul.addr %s915, 128
          %s917 = scalar_lea.hbm %s8, %s916
          %s919 = sshll.u32 %s908, 4
          %s920 = int_to_ptr.vmem [resolvable:$true] %s919
          %922 = dma.vmem_to_hbm [thread:$0]  %s920, 128, %s917, %s905
        $region72: #{rnn_forward.1} parent=51 // pred_fallthru
          _
        // Predicated region
        $region73: #{rnn_forward.1} parent=51 // pred_check
          %p923 = pneg %p265
        $region74: #{rnn_forward.1} parent=51 // pred_check_branch
          %925 = sbr.rel (%p923) target = $region76
        $region75: #{rnn_forward.1} parent=51 // pred_region
          %s927 = ssub.s32 128, 128
          %928 = vsyncadd [#allocation11], %s927
          %s929 = smul.addr %s31, 128
          %s930 = scalar_lea.hbm %s9, %s929
          %s932 = sshll.u32 [#allocation10], 4
          %s933 = int_to_ptr.vmem [resolvable:$true] %s932
          %935 = dma.vmem_to_hbm [thread:$0]  %s933, 128, %s930, [#allocation11]
        $region76: #{rnn_forward.1} parent=51 // pred_fallthru
          _
        // Predicated region
        $region77: #{rnn_forward.1} parent=51 // pred_check
          %p936 = pneg %p265
        $region78: #{rnn_forward.1} parent=51 // pred_check_branch
          %938 = sbr.rel (%p936) target = $region80
        $region79: #{rnn_forward.1} parent=51 // pred_region
          %939 = dma.done [#allocation11], 128
        $region80: #{rnn_forward.1} parent=51 // pred_fallthru
          _
      $region52: #{rnn_forward.1} parent=5 // pred_fallthru
        _
      %p940 = scmp.le.s32.totalorder 2, %s22
      // Predicated region
      $region81: #{rnn_forward.1} parent=5 // pred_check
        %p941 = pneg %p940
      $region82: #{rnn_forward.1} parent=5 // pred_check_branch
        %943 = sbr.rel (%p941) target = $region84
      $region83: #{rnn_forward.1} parent=5 // pred_region
        %s944 = ssub.s32 %s22, 2
        // Predicated region
        $region85: #{rnn_forward.1} parent=83 // pred_check
          %p945 = pneg %p245
        $region86: #{rnn_forward.1} parent=83 // pred_check_branch
          %947 = sbr.rel (%p945) target = $region88
        $region87: #{rnn_forward.1} parent=83 // pred_region
          %s948 = sand.u32 %s230, 1
          %s949 = scalar_lea.sflag [#allocation5], %s948
          %s950 = sand.u32 %s230, 1
          %s951 = smul.addr %s950, 8
          %s952 = scalar_lea.vmem [#allocation9], %s951
          %953 = dma.done %s949, 128
        $region88: #{rnn_forward.1} parent=83 // pred_fallthru
          _
      $region84: #{rnn_forward.1} parent=5 // pred_fallthru
        _
    $region6: #{rnn_forward.1} parent=1 // loop_footer
      %s26 = sadd.s32 1, %s22
    $region7: #{rnn_forward.1} parent=1 // loop_footer_branch
      %21 = sbr.rel target = $region3
    $region8: #{rnn_forward.1} parent=1 // loop_exit
      _
    %954 = vsyncpa [#allocation4], 1
    %s955 = scalar_lea.sflag [#allocation4], 1
    %956 = vsyncpa %s955, 1
    %957 = vsyncpa [#allocation7], 1
    %958 = vsyncpa [#allocation5], 1
    %s959 = scalar_lea.sflag [#allocation5], 1
    %960 = vsyncpa %s959, 1
    %961 = vsyncpa [#allocation11], 1

</llo_original>
